<compile_context>
chip_gen: v7x
topology: tpu7x:2x2x1
jax: 0.10.0
libtpu: 0.0.40
codegen_flags: <defaults>
</compile_context>

<pallas_src>
import functools

import jax
import jax.numpy as jnp
from jax import lax
from jax.experimental import pallas as pl
from jax.experimental.pallas import tpu as pltpu

_INV_SQRT2 = 0.7071067811865476


def _round_up(v, m):
    return -(-v // m) * m


# --------------------------- Pallas kernel --------------------------- #
def _conv_gelu_kernel(x_ref, w_ref, b_ref, o_ref, *, ws: int):
    """One batch image per grid step (flipped, channel-major orientation).

    x_ref : (1, KDp, Lin)   space-to-depth packed image, flat spatial (lane-dense)
    w_ref : (C_out, 4*KDp)  tap-major packed 3x3 weights (resident)
    b_ref : (C_out, 1)      bias (resident)
    o_ref : (1, C_out, Lo)  Lo = round_up(Ho*Ws, 128); junk cols sliced off in wrapper
    """
    lo = o_ref.shape[2]
    x = x_ref[0]                                             # (KDp, Lin)

    # 4 taps of the stride-1 2x2 conv on the s2d image == lane offsets 0, 1, Ws, Ws+1.
    # Concatenate along sublanes -> single MXU contraction of depth 4*KDp.
    xcat = jnp.concatenate(
        [x[:, off:off + lo] for off in (0, 1, ws, ws + 1)], axis=0)   # (4*KDp, Lo)

    acc = jnp.dot(w_ref[...], xcat, preferred_element_type=jnp.float32)  # (C_out, Lo)
    acc = acc + b_ref[...]

    # exact (erf) GELU -> matches torch.nn.functional.gelu(approximate='none');
    # only C_out (e.g. 8) sublanes wide, so the erf polynomial cost is tiny.
    y = 0.5 * acc * (1.0 + lax.erf(acc * _INV_SQRT2))
    o_ref[0] = y.astype(o_ref.dtype)


def _conv_gelu_pallas(xs_flat, w_flat, b_col, lo_p, ws):
    n, kdp, lin = xs_flat.shape
    c_out = w_flat.shape[0]

    # VMEM budget: double-buffered in/out blocks + in-kernel temporaries (tap slices,
    # sublane concat, f32 acc / GELU result). Capped at 48 MiB so it is v7x-safe.
    in_b = kdp * lin * 4
    out_b = c_out * lo_p * 4
    tmp_b = 8 * kdp * lo_p * 4 + 4 * out_b
    vmem_limit = int(min(max(2 * (in_b + out_b) + tmp_b + (2 << 20), 32 << 20), 48 << 20))

    cost = pl.CostEstimate(
        flops=2 * n * c_out * (4 * kdp) * lo_p,
        transcendentals=n * c_out * lo_p,
        bytes_accessed=4 * (xs_flat.size + w_flat.size + b_col.size + n * c_out * lo_p),
    )

    kernel = functools.partial(_conv_gelu_kernel, ws=ws)
    return pl.pallas_call(
        kernel,
        out_shape=jax.ShapeDtypeStruct((n, c_out, lo_p), jnp.float32),
        grid_spec=pltpu.PrefetchScalarGridSpec(
            num_scalar_prefetch=0,
            grid=(n,),
            in_specs=[
                pl.BlockSpec((1, kdp, lin), lambda i: (i, 0, 0)),   # streamed image
                pl.BlockSpec((c_out, 4 * kdp), lambda i: (0, 0)),   # resident weights
                pl.BlockSpec((c_out, 1), lambda i: (0, 0)),         # resident bias
            ],
            out_specs=pl.BlockSpec((1, c_out, lo_p), lambda i: (i, 0, 0)),
        ),
        compiler_params=pltpu.CompilerParams(
            dimension_semantics=("parallel",),
            vmem_limit_bytes=vmem_limit,
        ),
        cost_estimate=cost,
    )(xs_flat, w_flat, b_col)


# --------------------------- ConvBlock wrapper --------------------------- #
def conv_block_forward(x_nchw, weight, bias, batchnorm: bool = False):
    """Forward of ConvBlock(in_features, out_features, batchnorm=False).

    x_nchw : (N, C_in, H, W) float32
    weight : (C_out, C_in, 3, 3)   (PyTorch Conv2d layout)
    bias   : (C_out,)
    Returns: (N, C_out, H_out, W_out), H_out = (H + 2 - 3)//2 + 1
    """
    if batchnorm:
        # TODO(synk): training-mode BatchNorm2d (batch statistics) not implemented.
        raise NotImplementedError("ConvBlock(batchnorm=True) is not implemented")

    N, C_in, H, W = x_nchw.shape
    C_out = weight.shape[0]
    Ho = (H - 1) // 2 + 1          # == (H + 2*1 - 3)//2 + 1
    Wo = (W - 1) // 2 + 1
    Hs, Ws = Ho + 1, Wo + 1        # s2d grid incl. +1 row/col needed by the dy/dx=1 taps
    KD = 4 * C_in
    KDp = _round_up(KD, 8)                    # sublane-pad packed channel dim
    Lo_p = _round_up(Ho * Ws, 128)            # lane-dense output columns (full vst)
    Lin = _round_up(Lo_p + Ws + 1, 128)       # flat input length covering max tap offset

    # --- single fused relayout: NCHW -> channel-major space-to-depth, flat spatial ---
    # stride-2 3x3 conv == stride-1 2x2 conv over 4*C_in s2d channels.
    xf = x_nchw.astype(jnp.float32)
    xpad = jnp.pad(xf, ((0, 0), (0, 0), (1, 2 * Hs - H - 1), (1, 2 * Ws - W - 1)))
    xs = xpad.reshape(N, C_in, Hs, 2, Ws, 2).transpose(0, 3, 5, 1, 2, 4)  # (N,2,2,Ci,Hs,Ws)
    xs = xs.reshape(N, KD, Hs * Ws)
    xs = jnp.pad(xs, ((0, 0), (0, KDp - KD), (0, Lin - Hs * Ws)))         # (N, KDp, Lin)

    # --- weights (Co,Ci,3,3) -> tap-major (Co, 4*KDp); kh/kw==3 taps zero-padded ---
    wp = jnp.pad(weight.astype(jnp.float32), ((0, 0), (0, 0), (0, 1), (0, 1)))  # (Co,Ci,4,4)
    w6 = wp.reshape(C_out, C_in, 2, 2, 2, 2).transpose(0, 2, 4, 3, 5, 1)  # (Co,dy,dx,py,px,Ci)
    w6 = w6.reshape(C_out, 4, KD)
    w6 = jnp.pad(w6, ((0, 0), (0, 0), (0, KDp - KD)))
    w_flat = w6.reshape(C_out, 4 * KDp)
    b_col = bias.astype(jnp.float32).reshape(C_out, 1)

    out = _conv_gelu_pallas(xs, w_flat, b_col, Lo_p, Ws)                  # (N, Co, Lo_p)
    # Already channel-major (NCHW): just drop the junk halo column / pad lanes.
    out = out[:, :, : Ho * Ws].reshape(N, C_out, Ho, Ws)[:, :, :, :Wo]
    return out


# --------------------------- Reference (pure JAX) --------------------------- #
def _reference(x_nchw, weight, bias):
    y = lax.conv_general_dilated(
        x_nchw, weight,
        window_strides=(2, 2),
        padding=((1, 1), (1, 1)),
        dimension_numbers=("NCHW", "OIHW", "NCHW"),
        precision=lax.Precision.HIGHEST,
    ) + bias[None, :, None, None]
    return 0.5 * y * (1.0 + lax.erf(y * _INV_SQRT2))


if __name__ == "__main__":
    key = jax.random.PRNGKey(0)
    k_x, k_w, k_b, k_x2, k_x3, k_w3, k_b3 = jax.random.split(key, 7)

    fwd = jax.jit(functools.partial(conv_block_forward, batchnorm=False))

    # ---- primary test: ConvBlock(in_features=4, out_features=8), 16x16 ----
    N, C_in, H, W = 2, 4, 16, 16
    C_out = 8
    x = jax.random.normal(k_x, (N, C_in, H, W), dtype=jnp.float32)
    weight = jax.random.normal(k_w, (C_out, C_in, 3, 3), dtype=jnp.float32) * 0.1
    bias = jax.random.normal(k_b, (C_out,), dtype=jnp.float32) * 0.1

    out = jax.block_until_ready(fwd(x, weight, bias))
    ref = jax.block_until_ready(_reference(x, weight, bias))
    assert out.shape == (N, C_out, 8, 8), out.shape
    assert jnp.allclose(out, ref, atol=1e-4, rtol=1e-4), float(jnp.max(jnp.abs(out - ref)))

    # ---- secondary test: 32x32 input (different Ws / lane padding path) ----
    x2 = jax.random.normal(k_x2, (N, C_in, 32, 32), dtype=jnp.float32)
    out2 = jax.block_until_ready(fwd(x2, weight, bias))
    ref2 = jax.block_until_ready(_reference(x2, weight, bias))
    assert out2.shape == (N, C_out, 16, 16), out2.shape
    assert jnp.allclose(out2, ref2, atol=1e-4, rtol=1e-4), float(jnp.max(jnp.abs(out2 - ref2)))

    # ---- tertiary test: odd spatial size, non-multiple-of-8 channel counts ----
    C_in3, C_out3 = 3, 5
    x3 = jax.random.normal(k_x3, (N, C_in3, 15, 15), dtype=jnp.float32)
    w3 = jax.random.normal(k_w3, (C_out3, C_in3, 3, 3), dtype=jnp.float32) * 0.1
    b3 = jax.random.normal(k_b3, (C_out3,), dtype=jnp.float32) * 0.1
    out3 = jax.block_until_ready(fwd(x3, w3, b3))
    ref3 = jax.block_until_ready(_reference(x3, w3, b3))
    assert out3.shape == (N, C_out3, 8, 8), out3.shape
    assert jnp.allclose(out3, ref3, atol=1e-4, rtol=1e-4), float(jnp.max(jnp.abs(out3 - ref3)))

    print("KERNEL_OK")
</pallas_src>

<mosaic_0001>
module attributes {stable_mosaic.version = 11 : i64} {
  func.func @_conv_gelu_kernel(%arg0: i32, %arg1: memref<1x16x256xf32, #tpu.memory_space<vmem>>, %arg2: memref<8x64xf32, #tpu.memory_space<vmem>>, %arg3: memref<8x1xf32, #tpu.memory_space<vmem>>, %arg4: memref<1x8x128xf32, #tpu.memory_space<vmem>>) attributes {dimension_semantics = [#tpu.dimension_semantics<parallel>], iteration_bounds = array<i64: 2>, scalar_prefetch = 0 : i64, scratch_operands = 0 : i64, tpu.core_type = #tpu.core_type<tc>, window_params = [{transform_indices = @transform_0, window_bounds = array<i64: 1, 16, 256>}, {pipeline_mode = #tpu.pipeline_mode<synchronous>, transform_indices = @transform_1, window_bounds = array<i64: 8, 64>}, {pipeline_mode = #tpu.pipeline_mode<synchronous>, transform_indices = @transform_2, window_bounds = array<i64: 8, 1>}, {transform_indices = @transform_3, window_bounds = array<i64: 1, 8, 128>}]} {
    %c0 = arith.constant 0 : index
    %c0_0 = arith.constant 0 : index
    %c0_1 = arith.constant 0 : index
    %0 = vector.load %arg1[%c0, %c0_0, %c0_1] : memref<1x16x256xf32, #tpu.memory_space<vmem>>, vector<1x16x256xf32>
    %1 = vector.shape_cast %0 : vector<1x16x256xf32> to vector<16x256xf32>
    %2 = vector.extract_strided_slice %1 {offsets = [0, 0], sizes = [16, 128], strides = [1, 1]} : vector<16x256xf32> to vector<16x128xf32>
    %3 = vector.extract_strided_slice %1 {offsets = [0, 1], sizes = [16, 128], strides = [1, 1]} : vector<16x256xf32> to vector<16x128xf32>
    %4 = vector.extract_strided_slice %1 {offsets = [0, 9], sizes = [16, 128], strides = [1, 1]} : vector<16x256xf32> to vector<16x128xf32>
    %5 = vector.extract_strided_slice %1 {offsets = [0, 10], sizes = [16, 128], strides = [1, 1]} : vector<16x256xf32> to vector<16x128xf32>
    %6 = tpu.concatenate %2, %3, %4, %5 in 0 : vector<16x128xf32>, vector<16x128xf32>, vector<16x128xf32>, vector<16x128xf32> -> vector<64x128xf32>
    %c0_2 = arith.constant 0 : index
    %c0_3 = arith.constant 0 : index
    %7 = vector.load %arg2[%c0_2, %c0_3] : memref<8x64xf32, #tpu.memory_space<vmem>>, vector<8x64xf32>
    %cst = arith.constant dense<0.000000e+00> : vector<8x128xf32>
    %8 = tpu.matmul %7, %6, %cst {dimension_numbers = #tpu.dot_dimension_numbers<[1], [0], [0], [1], [0, 0, 1, 1], [], []>} : vector<8x64xf32>, vector<64x128xf32>, vector<8x128xf32> -> vector<8x128xf32>
    %c0_4 = arith.constant 0 : index
    %c0_5 = arith.constant 0 : index
    %9 = vector.load %arg3[%c0_4, %c0_5] : memref<8x1xf32, #tpu.memory_space<vmem>>, vector<8x1xf32>
    %10 = vector.broadcast %9 : vector<8x1xf32> to vector<8x128xf32>
    %11 = arith.addf %8, %10 : vector<8x128xf32>
    %cst_6 = arith.constant 5.000000e-01 : f32
    %12 = vector.broadcast %cst_6 : f32 to vector<8x128xf32>
    %13 = arith.mulf %12, %11 : vector<8x128xf32>
    %cst_7 = arith.constant 0.707106769 : f32
    %14 = vector.broadcast %cst_7 : f32 to vector<8x128xf32>
    %15 = arith.mulf %11, %14 : vector<8x128xf32>
    %16 = math.erf %15 : vector<8x128xf32>
    %cst_8 = arith.constant 1.000000e+00 : f32
    %17 = vector.broadcast %cst_8 : f32 to vector<8x128xf32>
    %18 = arith.addf %17, %16 : vector<8x128xf32>
    %19 = arith.mulf %13, %18 : vector<8x128xf32>
    %c0_9 = arith.constant 0 : index
    %c0_10 = arith.constant 0 : index
    %c0_11 = arith.constant 0 : index
    %20 = vector.load %arg4[%c0_9, %c0_10, %c0_11] : memref<1x8x128xf32, #tpu.memory_space<vmem>>, vector<1x8x128xf32>
    %21 = vector.shape_cast %20 : vector<1x8x128xf32> to vector<8x128xf32>
    %22 = vector.shape_cast %19 : vector<8x128xf32> to vector<1x8x128xf32>
    tpu.vector_store %arg4[%c0_9, %c0_10, %c0_11], %22 {strides = array<i32>} : memref<1x8x128xf32, #tpu.memory_space<vmem>>, vector<1x8x128xf32>,
    return
  }
  func.func @transform_0(%arg0: i32) -> (i32, i32, i32) {
    %c0_i32 = arith.constant 0 : i32
    %c0_i32_0 = arith.constant 0 : i32
    %c0_i32_1 = arith.constant 0 : i32
    return %arg0, %c0_i32, %c0_i32_0 : i32, i32, i32
  }
  func.func @transform_1(%arg0: i32) -> (i32, i32) {
    %c0_i32 = arith.constant 0 : i32
    %c0_i32_0 = arith.constant 0 : i32
    %c0_i32_1 = arith.constant 0 : i32
    return %c0_i32, %c0_i32_0 : i32, i32
  }
  func.func @transform_2(%arg0: i32) -> (i32, i32) {
    %c0_i32 = arith.constant 0 : i32
    %c0_i32_0 = arith.constant 0 : i32
    %c0_i32_1 = arith.constant 0 : i32
    return %c0_i32, %c0_i32_0 : i32, i32
  }
  func.func @transform_3(%arg0: i32) -> (i32, i32, i32) {
    %c0_i32 = arith.constant 0 : i32
    %c0_i32_0 = arith.constant 0 : i32
    %c0_i32_1 = arith.constant 0 : i32
    return %arg0, %c0_i32, %c0_i32_0 : i32, i32, i32
  }
}

</mosaic_0001>

<llo_original>
// kernel: conv_block_forward.1
$region0: #{conv_block_forward.1}
  #allocation0 [shape = 'u32[]', space=smem, size = 0x4, offset = 0x4, fixed_abs, tag = 'smem constant byte address 0x4 - core index']
  #allocation1 [shape = 'u32[144,128]{1,0:T(1,128)}', space=vmem, size = 0x12000, scoped, tag = 'internal scratch']
  %s0 = inlined_call_operand.vmem [shape: f32[2,16,256], index: 0, kind: input, shape index: {}]
  %s1 = inlined_call_operand.vmem [shape: f32[8,64], index: 1, kind: input, shape index: {}]
  %s2 = inlined_call_operand.vmem [shape: f32[8,1], index: 2, kind: input, shape index: {}]
  %s3 = inlined_call_operand.vmem [shape: f32[2,8,128], index: 3, kind: output, shape index: {}]
  %s4 = sld [smem:[#allocation0]]
  $region45: #{conv_block_forward.1} parent=0
    _
  %s6 = ssub.s32 1, %s4
  %s7 = scalar_select 0, %s6, %s4
  loop: start=0, step=1, limit=4
  $region2: #{conv_block_forward.1} parent=0 // loop_pre_header
    _
  $region3: #{conv_block_forward.1} parent=0 // loop_header
    %s9 = sphi 0, %s13
    %p10 = scmp.ge.s32.totalorder %s9, 4
    %s19 = sphi 0, %s21
    %s22 = sphi 0, %s19
    %s23 = sphi 0, %s22
    %s39 = sphi 0, %s23
    %s43 = sphi 0, %s43
    %s45 = sphi 0, %s43
    %s46 = sphi 0, %s45
    %s60 = sphi 0, %s46
    %s64 = sphi 0, %s64
    %s66 = sphi 0, %s64
    %s67 = sphi 0, %s66
    %s81 = sphi 0, %s67
    %s87 = sphi 0, %s89
    %s90 = sphi 0, %s87
    %s91 = sphi 0, %s90
    %s107 = sphi 0, %s91
  $region4: #{conv_block_forward.1} parent=0 // loop_header_branch
    %12 = sbr.rel (%p10) target = $region8
  $region5: #{conv_block_forward.1} parent=0 // loop_body
    %s14 = ssub.s32 %s9, 1
    %s15 = ssub.s32 %s9, 2
    %s16 = sadd.s32 %s9, 1
    %s17 = ssub.s32 %s9, %s16
    %p18 = scmp.eq.s32.totalorder %s17, 0
    %s20 = sadd.s32 %s19, 1
    %s21 = scalar_select %p18, %s19, %s20
    %p24 = pneg %p18
    %p25 = scmp.eq.s32.totalorder %s9, 1
    %p26 = por %p24, %p25
    %p27 = scmp.ne.s32.totalorder %s19, %s22
    %p28 = scmp.eq.s32.totalorder %s9, 0
    %p29 = por %p27, %p28
    %p30 = scmp.ne.s32.totalorder %s19, %s22
    %p31 = scmp.eq.s32.totalorder %s14, 1
    %p32 = por %p30, %p31
    %p33 = scmp.ne.s32.totalorder %s22, %s23
    %p34 = scmp.eq.s32.totalorder %s14, 0
    %p35 = por %p33, %p34
    %p36 = scmp.ne.s32.totalorder %s22, %s23
    %p37 = scmp.eq.s32.totalorder %s15, 1
    %p38 = por %p36, %p37
    %p40 = scmp.ne.s32.totalorder %s23, %s39
    %p41 = scmp.eq.s32.totalorder %s15, 0
    %p42 = por %p40, %p41
    %s44 = sadd.s32 %s43, 1
    %p47 = scmp.eq.s32.totalorder %s9, 1
    %p48 = scmp.ne.s32.totalorder %s43, %s45
    %p49 = scmp.eq.s32.totalorder %s9, 0
    %p50 = por %p48, %p49
    %p51 = scmp.ne.s32.totalorder %s43, %s45
    %p52 = scmp.eq.s32.totalorder %s14, 1
    %p53 = por %p51, %p52
    %p54 = scmp.ne.s32.totalorder %s45, %s46
    %p55 = scmp.eq.s32.totalorder %s14, 0
    %p56 = por %p54, %p55
    %p57 = scmp.ne.s32.totalorder %s45, %s46
    %p58 = scmp.eq.s32.totalorder %s15, 1
    %p59 = por %p57, %p58
    %p61 = scmp.ne.s32.totalorder %s46, %s60
    %p62 = scmp.eq.s32.totalorder %s15, 0
    %p63 = por %p61, %p62
    %s65 = sadd.s32 %s64, 1
    %p68 = scmp.eq.s32.totalorder %s9, 1
    %p69 = scmp.ne.s32.totalorder %s64, %s66
    %p70 = scmp.eq.s32.totalorder %s9, 0
    %p71 = por %p69, %p70
    %p72 = scmp.ne.s32.totalorder %s64, %s66
    %p73 = scmp.eq.s32.totalorder %s14, 1
    %p74 = por %p72, %p73
    %p75 = scmp.ne.s32.totalorder %s66, %s67
    %p76 = scmp.eq.s32.totalorder %s14, 0
    %p77 = por %p75, %p76
    %p78 = scmp.ne.s32.totalorder %s66, %s67
    %p79 = scmp.eq.s32.totalorder %s15, 1
    %p80 = por %p78, %p79
    %p82 = scmp.ne.s32.totalorder %s67, %s81
    %p83 = scmp.eq.s32.totalorder %s15, 0
    %p84 = por %p82, %p83
    %s85 = ssub.s32 %s9, %s16
    %p86 = scmp.eq.s32.totalorder %s85, 0
    %s88 = sadd.s32 %s87, 1
    %s89 = scalar_select %p86, %s87, %s88
    %p92 = pneg %p86
    %p93 = scmp.eq.s32.totalorder %s9, 1
    %p94 = por %p92, %p93
    %p95 = scmp.ne.s32.totalorder %s87, %s90
    %p96 = scmp.eq.s32.totalorder %s9, 0
    %p97 = por %p95, %p96
    %p98 = scmp.ne.s32.totalorder %s87, %s90
    %p99 = scmp.eq.s32.totalorder %s14, 1
    %p100 = por %p98, %p99
    %p101 = scmp.ne.s32.totalorder %s90, %s91
    %p102 = scmp.eq.s32.totalorder %s14, 0
    %p103 = por %p101, %p102
    %p104 = scmp.ne.s32.totalorder %s90, %s91
    %p105 = scmp.eq.s32.totalorder %s15, 1
    %p106 = por %p104, %p105
    %p108 = scmp.ne.s32.totalorder %s91, %s107
    %p109 = scmp.eq.s32.totalorder %s15, 0
    %p110 = por %p108, %p109
    %p111 = scmp.le.s32.totalorder 1, %s9
    %p112 = scmp.lt.s32.totalorder %s9, 3
    %p113 = pnand %p111, %p112
    %p114 = pneg %p113
    // Predicated region
    $region9: #{conv_block_forward.1} parent=5 // pred_check
      _
    $region10: #{conv_block_forward.1} parent=5 // pred_check_branch
      %116 = sbr.rel (%p113) target = $region12
    $region11: #{conv_block_forward.1} parent=5 // pred_region
      %s117 = ssub.s32 %s9, 1
      // Predicated region
      $region13: #{conv_block_forward.1} parent=11 // pred_check
        %p118 = pneg %p56
      $region14: #{conv_block_forward.1} parent=11 // pred_check_branch
        %120 = sbr.rel (%p118) target = $region16
      $region15: #{conv_block_forward.1} parent=11 // pred_region
        _
      $region16: #{conv_block_forward.1} parent=11 // pred_fallthru
        _
      // Predicated region
      $region17: #{conv_block_forward.1} parent=11 // pred_check
        %p121 = pneg %p77
      $region18: #{conv_block_forward.1} parent=11 // pred_check_branch
        %123 = sbr.rel (%p121) target = $region20
      $region19: #{conv_block_forward.1} parent=11 // pred_region
        _
      $region20: #{conv_block_forward.1} parent=11 // pred_fallthru
        _
    $region12: #{conv_block_forward.1} parent=5 // pred_fallthru
      _
    %p124 = scmp.lt.s32.totalorder %s9, 2
    // Predicated region
    $region21: #{conv_block_forward.1} parent=5 // pred_check
      %p125 = pneg %p124
    $region22: #{conv_block_forward.1} parent=5 // pred_check_branch
      %127 = sbr.rel (%p125) target = $region24
    $region23: #{conv_block_forward.1} parent=5 // pred_region
      // Predicated region
      $region25: #{conv_block_forward.1} parent=23 // pred_check
        %p128 = pneg %p29
      $region26: #{conv_block_forward.1} parent=23 // pred_check_branch
        %130 = sbr.rel (%p128) target = $region28
      $region27: #{conv_block_forward.1} parent=23 // pred_region
        %p131 = scmp.lt.s32.totalorder %s9, 1
        %s132 = scalar_select %p131, %s9, 1
        %s133 = smul.addr %s132, 4
        %s134 = smul.addr %s133, 8
        %s135 = scalar_lea.vmem %s0, %s134
      $region28: #{conv_block_forward.1} parent=23 // pred_fallthru
        _
    $region24: #{conv_block_forward.1} parent=5 // pred_fallthru
      _
    %p136 = scmp.le.s32.totalorder 1, %s9
    %p137 = scmp.lt.s32.totalorder %s9, 3
    %p138 = pnand %p136, %p137
    %p139 = pneg %p138
    // Predicated region
    $region29: #{conv_block_forward.1} parent=5 // pred_check
      _
    $region30: #{conv_block_forward.1} parent=5 // pred_check_branch
      %141 = sbr.rel (%p138) target = $region32
    $region31: #{conv_block_forward.1} parent=5 // pred_region
      %s142 = ssub.s32 %s9, 1
      %p143 = scmp.lt.s32.totalorder %s14, 1
      %s144 = scalar_select %p143, %s14, 1
      %s145 = smul.addr %s144, 4
      %s146 = smul.addr %s145, 8
      %s147 = scalar_lea.vmem %s0, %s146
      %p148 = pneg %p35
      %p149 = pneg %p32
      %p150 = pneg %p56
      %p151 = pneg %p53
      %p152 = pneg %p77
      %p153 = pneg %p74
      %p154 = pneg %p103
      %p155 = pneg %p100
      %p156 = scmp.lt.s32.totalorder %s14, 1
      %s157 = scalar_select %p156, %s14, 1
      %s158 = smul.addr %s157, 8
      %s159 = scalar_lea.vmem %s3, %s158
      %p160 = scmp.lt.s32.totalorder %s14, 1
      %s161 = scalar_select %p160, %s14, 1
      %s162 = smul.addr %s161, 4
      %s163 = smul.addr %s162, 8
      %s164 = scalar_lea.vmem %s0, %s163
      %p165 = scmp.lt.s32.totalorder %s14, 1
      %s166 = scalar_select %p165, %s14, 1
      %s167 = smul.addr %s166, 8
      %s168 = scalar_lea.vmem %s3, %s167
      %v169 = vld [vmem:[%s164] sm:$0xff]
      %v170 = vld [vmem:[%s164 + $0x8] sm:$0xff]
      %v171 = vld [vmem:[%s164 + $0x10] sm:$0xff]
      %v172 = vld [vmem:[%s164 + $0x18] sm:$0xff]
      %177 = vrot.lane.b32.xlu0 %v169, 127
      %v178 = vpop.permute.xlu0 %177
      %179 = vrot.lane.b32.xlu0 %v170, 127
      %v180 = vpop.permute.xlu0 %179
      %181 = vrot.lane.b32.xlu0 %v171, 127
      %v182 = vpop.permute.xlu0 %181
      %183 = vrot.lane.b32.xlu0 %v172, 127
      %v184 = vpop.permute.xlu0 %183
      %vm185 = vcmask 1039360
      %v186 = vsel %vm185, %v178, %v180
      %v187 = vsel %vm185, %v182, %v184
      %190 = vrot.lane.b32.xlu0 %v169, 119
      %v191 = vpop.permute.xlu0 %190
      %192 = vrot.lane.b32.xlu0 %v170, 119
      %v193 = vpop.permute.xlu0 %192
      %194 = vrot.lane.b32.xlu0 %v171, 119
      %v195 = vpop.permute.xlu0 %194
      %196 = vrot.lane.b32.xlu0 %v172, 119
      %v197 = vpop.permute.xlu0 %196
      %vm198 = vcmask 973824
      %v199 = vsel %vm198, %v191, %v193
      %v200 = vsel %vm198, %v195, %v197
      %203 = vrot.lane.b32.xlu0 %v169, 118
      %v204 = vpop.permute.xlu0 %203
      %205 = vrot.lane.b32.xlu0 %v170, 118
      %v206 = vpop.permute.xlu0 %205
      %207 = vrot.lane.b32.xlu0 %v171, 118
      %v208 = vpop.permute.xlu0 %207
      %209 = vrot.lane.b32.xlu0 %v172, 118
      %v210 = vpop.permute.xlu0 %209
      %vm211 = vcmask 965632
      %v212 = vsel %vm211, %v204, %v206
      %v213 = vsel %vm211, %v208, %v210
      %v216 = vld [vmem:[%s1] sm:$0xff]
      %v217 = vld [vmem:[%s2] sm:$0xff]
      %219 = vset.pattern.permute.xlu0 0
      %220 = vperm.xlu0 %219, %v217
      %v221 = vpop.permute.xlu0 %220
      %vm223 = vcmask 523264
      %v225 = vsel %vm223, %v216, 0
      %227 = vmatprep.subr.mxu0 0.0
      %228 = vmatpush1.msra.mxu0 %v169
      %229 = vmatprep.subr.mxu0 0.0
      %230 = vmatpush1.msra.mxu0 %v171
      %231 = vmatprep.subr.mxu0 0.0
      %232 = vmatpush1.msra.mxu0 %v186
      %233 = vmatprep.subr.mxu0 0.0
      %234 = vmatpush1.msra.mxu0 %v187
      %235 = vmatprep.subr.mxu0 0.0
      %236 = vmatpush1.msra.mxu0 %v199
      %237 = vmatprep.subr.mxu0 0.0
      %238 = vmatpush1.msra.mxu0 %v200
      %239 = vmatprep.subr.mxu0 0.0
      %240 = vmatpush1.msra.mxu0 %v212
      %241 = vmatprep.subr.mxu0 0.0
      %242 = vmatpush1.msra.mxu0 %v213
      %243 = vmatprep.subr.mxu0 0.0
      %244 = vmatpush1.msra.mxu0 0.0
      %245 = vmatprep.subr.mxu0 0.0
      %246 = vmatpush1.msra.mxu0 0.0
      %247 = vmatprep.subr.mxu0 0.0
      %248 = vmatpush1.msra.mxu0 0.0
      %249 = vmatprep.subr.mxu0 0.0
      %250 = vmatpush1.msra.mxu0 0.0
      %251 = vmatprep.subr.mxu0 0.0
      %252 = vmatpush1.msra.mxu0 0.0
      %253 = vmatprep.subr.mxu0 0.0
      %254 = vmatpush1.msra.mxu0 0.0
      %255 = vmatprep.subr.mxu0 0.0
      %256 = vmatpush1.msra.mxu0 0.0
      %257 = vmatprep.subr.mxu0 0.0
      %258 = vmatpush1.msra.mxu0 0.0
      %259 = vmatprep.subr.mxu0 0.0
      %260 = vmatpush1.msra.mxu0 0.0
      %261 = vmatprep.subr.mxu0 0.0
      %262 = vmatpush1.msra.mxu0 0.0
      %263 = vmatprep.subr.mxu0 0.0
      %264 = vmatpush1.msra.mxu0 0.0
      %265 = vmatprep.subr.mxu0 0.0
      %266 = vmatpush1.msra.mxu0 0.0
      %267 = vmatprep.subr.mxu0 0.0
      %268 = vmatpush1.msra.mxu0 0.0
      %269 = vmatprep.subr.mxu0 0.0
      %270 = vmatpush1.msra.mxu0 0.0
      %271 = vmatprep.subr.mxu0 0.0
      %272 = vmatpush1.msra.mxu0 0.0
      %273 = vmatprep.subr.mxu0 0.0
      %274 = vmatpush1.msra.mxu0 0.0
      %275 = vmatprep.subr.mxu0 0.0
      %276 = vmatpush1.msra.mxu0 0.0
      %277 = vmatprep.subr.mxu0 0.0
      %278 = vmatpush1.msra.mxu0 0.0
      %279 = vmatprep.subr.mxu0 0.0
      %280 = vmatpush1.msra.mxu0 0.0
      %281 = vmatprep.subr.mxu0 0.0
      %282 = vmatpush1.msra.mxu0 0.0
      %283 = vmatprep.subr.mxu0 0.0
      %284 = vmatpush1.msra.mxu0 0.0
      %285 = vmatprep.subr.mxu0 0.0
      %286 = vmatpush1.msra.mxu0 0.0
      %287 = vmatprep.subr.mxu0 0.0
      %288 = vmatpush1.msra.mxu0 0.0
      %289 = vmatprep.subr.mxu0 0.0
      %290 = vmatpush1.msra.mxu0 0.0
      %291 = vmatprep.mubr.f32.mxu0 0.0
      %292 = vmatmul.mubr.f32.gmra.mrb[0].mxu0 %v225
      %v293 = vpop.f32.mrb[0].mxu0
      %v294 = vadd.f32 %v221, %v293
      %v295 = vpop.f32.mrb[0].mxu0
      %296 = vdwg.mxu0
      %v297 = vmul.f32 %v294, 0.5
      %v298 = vmul.f32 %v294, 0.70710677
      %v299 = verf.f32.pop %v298
      %v300 = vadd.f32 %v299, 1.0
      %v301 = vmul.f32 %v297, %v300
      %302 = vst [vmem:[%s168] sm:$0xff] %v301
      %p303 = scmp.lt.s32.totalorder %s14, 1
      %s304 = scalar_select %p303, %s14, 1
      %s305 = smul.addr %s304, 8
      %s306 = scalar_lea.vmem %s3, %s305
      // Predicated region
      $region33: #{conv_block_forward.1} parent=31 // pred_check
        %p307 = pneg %p100
      $region34: #{conv_block_forward.1} parent=31 // pred_check_branch
        %309 = sbr.rel (%p307) target = $region36
      $region35: #{conv_block_forward.1} parent=31 // pred_region
        _
      $region36: #{conv_block_forward.1} parent=31 // pred_fallthru
        _
    $region32: #{conv_block_forward.1} parent=5 // pred_fallthru
      _
    %p310 = scmp.le.s32.totalorder 2, %s9
    // Predicated region
    $region37: #{conv_block_forward.1} parent=5 // pred_check
      %p311 = pneg %p310
    $region38: #{conv_block_forward.1} parent=5 // pred_check_branch
      %313 = sbr.rel (%p311) target = $region40
    $region39: #{conv_block_forward.1} parent=5 // pred_region
      %s314 = ssub.s32 %s9, 2
      // Predicated region
      $region41: #{conv_block_forward.1} parent=39 // pred_check
        %p315 = pneg %p106
      $region42: #{conv_block_forward.1} parent=39 // pred_check_branch
        %317 = sbr.rel (%p315) target = $region44
      $region43: #{conv_block_forward.1} parent=39 // pred_region
        %p318 = scmp.lt.s32.totalorder %s15, 1
        %s319 = scalar_select %p318, %s15, 1
        %s320 = smul.addr %s319, 8
        %s321 = scalar_lea.vmem %s3, %s320
      $region44: #{conv_block_forward.1} parent=39 // pred_fallthru
        _
    $region40: #{conv_block_forward.1} parent=5 // pred_fallthru
      _
  $region6: #{conv_block_forward.1} parent=0 // loop_footer
    %s13 = sadd.s32 1, %s9
  $region7: #{conv_block_forward.1} parent=0 // loop_footer_branch
    %8 = sbr.rel target = $region3
  $region8: #{conv_block_forward.1} parent=0 // loop_exit
    _

</llo_original>
